<compile_context>
chip_gen: v6e
topology: v6e:2x2x1
jax: 0.10.0
libtpu: 0.0.40
codegen_flags: <defaults>
</compile_context>

<pallas_src>
import math
import functools

import jax
import jax.numpy as jnp
from jax import lax
from jax.experimental import pallas as pl
from jax.experimental.pallas import tpu as pltpu


# ----------------------------------------------------------------------------
# Tiling helpers (review item: harden _pick_tile — pad instead of full-dim fallback)
# ----------------------------------------------------------------------------
def _round_up(x, m):
    return ((x + m - 1) // m) * m


def _choose_tile(dim, preferred):
    """Tile = min(preferred, dim rounded up to a sublane multiple of 8).
    The caller pads the dimension up to a multiple of this tile."""
    return min(_round_up(preferred, 8), _round_up(max(dim, 1), 8))


def _pad_time(x, t_pad):
    t = x.shape[1]
    if t == t_pad:
        return x
    return jnp.pad(x, ((0, 0), (0, t_pad - t), (0, 0)))


# ----------------------------------------------------------------------------
# Kernel 1: lane-dense linear projection   x @ W^T + b  ->  (B, T, n_feat) bf16
#   Full n_feat matmul N-dim (MXU-friendly) and unmasked lane-dense stores.
# ----------------------------------------------------------------------------
def _proj_kernel(x_ref, w_ref, b_ref, o_ref):
    # x: (1, tt, K) f32   w: (K, n_feat) bf16   b: (1, n_feat) f32   o: (1, tt, n_feat) bf16
    x = x_ref[0].astype(jnp.bfloat16)                       # bf16 MXU input
    y = jnp.dot(x, w_ref[...], preferred_element_type=jnp.float32)
    o_ref[0] = (y + b_ref[...]).astype(o_ref.dtype)


def _linear_projection(x, w, b, t_tile):
    """x: (B, T, K) f32, w: (n_feat, K) [torch layout], b: (n_feat,) -> (B, T, n_feat) bf16."""
    B, T, K = x.shape
    n_feat = w.shape[0]
    assert T % t_tile == 0
    w_t = w.T.astype(jnp.bfloat16)          # one-time tiny weight prep (no in-kernel transpose)
    b2 = b.reshape(1, n_feat).astype(jnp.float32)
    return pl.pallas_call(
        _proj_kernel,
        out_shape=jax.ShapeDtypeStruct((B, T, n_feat), jnp.bfloat16),
        grid=(B, T // t_tile),
        in_specs=[
            pl.BlockSpec((1, t_tile, K), lambda b_, t_: (b_, t_, 0)),
            pl.BlockSpec((K, n_feat), lambda b_, t_: (0, 0)),
            pl.BlockSpec((1, n_feat), lambda b_, t_: (0, 0)),
        ],
        out_specs=pl.BlockSpec((1, t_tile, n_feat), lambda b_, t_: (b_, t_, 0)),
        compiler_params=pltpu.CompilerParams(
            dimension_semantics=("parallel", "parallel"),
            vmem_limit_bytes=32 * 1024 * 1024),
    )(x, w_t, b2)


# ----------------------------------------------------------------------------
# Kernel 2: flash attention (online softmax over kv tiles) with the output
#           projection fused into the finalize.  All HBM blocks keep a full
#           n_feat last dim (lane-dense loads/stores); heads are a static
#           in-kernel loop with per-head VMEM accumulators.
# ----------------------------------------------------------------------------
def _flash_fused_kernel(q_ref, k_ref, v_ref, wo_ref, bo_ref, o_ref,
                        m_sc, l_sc, acc_sc, *, n_head, d, kv_len, need_mask):
    ki = pl.program_id(2)

    @pl.when(ki == 0)
    def _init():
        m_sc[...] = jnp.full(m_sc.shape, -1e30, m_sc.dtype)
        l_sc[...] = jnp.zeros(l_sc.shape, l_sc.dtype)
        acc_sc[...] = jnp.zeros(acc_sc.shape, acc_sc.dtype)

    q = q_ref[0]                      # (tq, n_feat) bf16 — 1/sqrt(d) already folded into Wq
    k = k_ref[0]                      # (tk, n_feat) bf16
    v = v_ref[0]                      # (tk, n_feat) bf16
    tk = k.shape[0]

    if need_mask:                     # static: only emitted when Tk was padded
        col = ki * tk + lax.broadcasted_iota(jnp.int32, (1, tk), 1)
        valid = col < kv_len

    for h in range(n_head):           # static unroll — HBM blocks stay lane-dense
        lo = h * d
        q_h = q[:, lo:lo + d]
        k_h = k[:, lo:lo + d]
        v_h = v[:, lo:lo + d]
        s = lax.dot_general(q_h, k_h, (((1,), (1,)), ((), ())),     # NT matmul, (tq, tk) f32
                            preferred_element_type=jnp.float32)
        if need_mask:
            s = jnp.where(valid, s, -1e30)
        m_prev = m_sc[h]
        m_new = jnp.maximum(m_prev, jnp.max(s, axis=-1, keepdims=True))
        alpha = jnp.exp(m_prev - m_new)
        # TODO(synk): on v6e/v7x the exp path could run in bf16 (EUP-bound); kept f32
        # here to stay close to the f32 PyTorch reference.
        p = jnp.exp(s - m_new)
        l_sc[h] = alpha * l_sc[h] + jnp.sum(p, axis=-1, keepdims=True)
        acc_sc[h] = alpha * acc_sc[h] + jnp.dot(p.astype(v_h.dtype), v_h,     # bf16 P into MXU
                                                preferred_element_type=jnp.float32)
        m_sc[h] = m_new

    @pl.when(ki == pl.num_programs(2) - 1)
    def _finalize():
        # Fused output projection: sum_h softmax_h(QK^T) V_h @ Wo_h + bo, written as a
        # lane-dense (tq, n_feat) slab.  Dropout is identity (eval / p=0.0) — no RNG.
        acc_out = None
        for h in range(n_head):
            l = l_sc[h]
            inv = pl.reciprocal(l, approx=True)       # EUP slot (otherwise idle here)
            inv = inv * (2.0 - l * inv)               # one Newton step -> f32-accurate
            x_h = (acc_sc[h] * inv).astype(wo_ref.dtype)          # (tq, d) bf16
            y = jnp.dot(x_h, wo_ref[h], preferred_element_type=jnp.float32)
            acc_out = y if acc_out is None else acc_out + y
        o_ref[0] = (acc_out + bo_ref[...]).astype(o_ref.dtype)


def _flash_attention_fused(qp, kp, vp, wo_h, bo, *, n_head, d, tq, tk, kv_len):
    B, Tq_pad, n_feat = qp.shape
    Tk_pad = kp.shape[1]
    need_mask = (Tk_pad != kv_len)
    kernel = functools.partial(_flash_fused_kernel, n_head=n_head, d=d,
                               kv_len=kv_len, need_mask=need_mask)
    return pl.pallas_call(
        kernel,
        out_shape=jax.ShapeDtypeStruct((B, Tq_pad, n_feat), jnp.float32),
        grid=(B, Tq_pad // tq, Tk_pad // tk),     # kv axis last = the reduction axis
        in_specs=[
            pl.BlockSpec((1, tq, n_feat), lambda b, qi, ki: (b, qi, 0)),
            # K/V: add pipeline_mode=pl.Buffered(3) here if profiling shows exposed DMA.
            pl.BlockSpec((1, tk, n_feat), lambda b, qi, ki: (b, ki, 0)),
            pl.BlockSpec((1, tk, n_feat), lambda b, qi, ki: (b, ki, 0)),
            pl.BlockSpec((n_head, d, n_feat), lambda b, qi, ki: (0, 0, 0)),   # Wo resident
            pl.BlockSpec((1, n_feat), lambda b, qi, ki: (0, 0)),
        ],
        out_specs=pl.BlockSpec((1, tq, n_feat), lambda b, qi, ki: (b, qi, 0)),
        scratch_shapes=[
            pltpu.VMEM((n_head, tq, 1), jnp.float32),   # running max per head
            pltpu.VMEM((n_head, tq, 1), jnp.float32),   # running denominator per head
            pltpu.VMEM((n_head, tq, d), jnp.float32),   # per-head output accumulator
        ],
        compiler_params=pltpu.CompilerParams(
            dimension_semantics=("parallel", "parallel", "arbitrary"),
            vmem_limit_bytes=64 * 1024 * 1024),           # explicit budget (v7x: 64 MiB VMEM)
    )(qp, kp, vp, wo_h, bo)


# ----------------------------------------------------------------------------
# Full forward
# ----------------------------------------------------------------------------
def multi_head_attention(q, k, v, params, n_head, *, q_tile=512, kv_tile=512):
    """Forward pass equivalent to MultiHeadAttention.forward (eval mode)."""
    B, Tq, _ = q.shape
    Tk = k.shape[1]
    n_feat = params["wq"].shape[0]
    assert n_feat % n_head == 0
    d = n_feat // n_head
    scale = 1.0 / math.sqrt(d)

    tq = _choose_tile(Tq, q_tile)
    tk = _choose_tile(Tk, kv_tile)
    Tq_pad = _round_up(Tq, tq)
    Tk_pad = _round_up(Tk, tk)
    qx = _pad_time(q, Tq_pad)
    kx = _pad_time(k, Tk_pad)
    vx = _pad_time(v, Tk_pad)

    # (1) fold 1/sqrt(d) into the tiny q weights/bias once — no per-step scaling.
    qp = _linear_projection(qx, params["wq"] * scale, params["bq"] * scale, tq)   # (B,Tq_pad,F) bf16
    kp = _linear_projection(kx, params["wk"], params["bk"], tk)                   # (B,Tk_pad,F) bf16
    vp = _linear_projection(vx, params["wv"], params["bv"], tk)                   # (B,Tk_pad,F) bf16

    # Per-head output-projection weights: rows h*d:(h+1)*d of Wo^T (tiny one-time prep).
    wo_h = params["wo"].T.reshape(n_head, d, n_feat).astype(jnp.bfloat16)
    bo2 = params["bo"].reshape(1, n_feat).astype(jnp.float32)

    out = _flash_attention_fused(qp, kp, vp, wo_h, bo2, n_head=n_head, d=d,
                                 tq=tq, tk=tk, kv_len=Tk)                         # (B,Tq_pad,F) f32
    if Tq_pad != Tq:
        out = out[:, :Tq]
    return out


# ----------------------------------------------------------------------------
# Deterministic parameter init (PyTorch nn.Linear-style uniform) + f32 reference
# ----------------------------------------------------------------------------
def _init_linear(key, out_f, in_f):
    kw, kb = jax.random.split(key)
    bound = 1.0 / math.sqrt(in_f)
    w = jax.random.uniform(kw, (out_f, in_f), jnp.float32, -bound, bound)
    b = jax.random.uniform(kb, (out_f,), jnp.float32, -bound, bound)
    return w, b


def _reference(q, k, v, params, n_head):
    # Pure-JAX f32 reference reproducing the PyTorch forward (eval mode).
    B, Tq, _ = q.shape
    Tk = k.shape[1]
    n_feat = params["wq"].shape[0]
    d = n_feat // n_head
    qp = (q @ params["wq"].T + params["bq"]).reshape(B, Tq, n_head, d).transpose(0, 2, 1, 3)
    kp = (k @ params["wk"].T + params["bk"]).reshape(B, Tk, n_head, d).transpose(0, 2, 1, 3)
    vp = (v @ params["wv"].T + params["bv"]).reshape(B, Tk, n_head, d).transpose(0, 2, 1, 3)
    scores = jnp.einsum("bhqd,bhkd->bhqk", qp, kp) / math.sqrt(d)
    attn = jax.nn.softmax(scores, axis=-1)
    x = jnp.einsum("bhqk,bhkd->bhqd", attn, vp)
    x = x.transpose(0, 2, 1, 3).reshape(B, Tq, n_feat)
    return x @ params["wo"].T + params["bo"]


if __name__ == "__main__":
    # Small config: q_dim=k_dim=v_dim=16, n_feat=32, n_head=4 (d=8), dropout_rate=0.0.
    q_dim = k_dim = v_dim = 16
    n_feat, n_head = 32, 4

    root = jax.random.PRNGKey(0)
    kq, kk, kv, k0, k1, k2, k3 = jax.random.split(root, 7)
    wq, bq = _init_linear(k0, n_feat, q_dim)
    wk, bk = _init_linear(k1, n_feat, k_dim)
    wv, bv = _init_linear(k2, n_feat, v_dim)
    wo, bo = _init_linear(k3, n_feat, n_feat)
    params = dict(wq=wq, bq=bq, wk=wk, bk=bk, wv=wv, bv=bv, wo=wo, bo=bo)

    # bf16 MXU inputs / bf16 intermediates (per perf review) -> relaxed tolerance vs f32 ref.
    ATOL = RTOL = 5e-2

    # Case 1: batch=2, seq=8 (tile-aligned path).
    q = jax.random.normal(kq, (2, 8, q_dim), jnp.float32)
    k = jax.random.normal(kk, (2, 8, k_dim), jnp.float32)
    v = jax.random.normal(kv, (2, 8, v_dim), jnp.float32)
    out = jax.block_until_ready(multi_head_attention(q, k, v, params, n_head))
    ref = _reference(q, k, v, params, n_head)
    assert out.shape == ref.shape
    assert jnp.allclose(out, ref, atol=ATOL, rtol=RTOL), float(jnp.max(jnp.abs(out - ref)))

    # Case 2: ragged lengths (Tq=11, Tk=13) exercising the pad + in-kernel kv mask path.
    q2 = jax.random.normal(jax.random.PRNGKey(1), (1, 11, q_dim), jnp.float32)
    k2 = jax.random.normal(jax.random.PRNGKey(2), (1, 13, k_dim), jnp.float32)
    v2 = jax.random.normal(jax.random.PRNGKey(3), (1, 13, v_dim), jnp.float32)
    out2 = jax.block_until_ready(multi_head_attention(q2, k2, v2, params, n_head))
    ref2 = _reference(q2, k2, v2, params, n_head)
    assert out2.shape == ref2.shape
    assert jnp.allclose(out2, ref2, atol=ATOL, rtol=RTOL), float(jnp.max(jnp.abs(out2 - ref2)))

    print("KERNEL_OK")
</pallas_src>

<mosaic_0001>
module attributes {stable_mosaic.version = 11 : i64} {
  func.func @_proj_kernel(%arg0: i32, %arg1: i32, %arg2: memref<1x8x16xf32, #tpu.memory_space<vmem>>, %arg3: memref<16x32xbf16, #tpu.memory_space<vmem>>, %arg4: memref<1x32xf32, #tpu.memory_space<vmem>>, %arg5: memref<1x8x32xbf16, #tpu.memory_space<vmem>>) attributes {dimension_semantics = [#tpu.dimension_semantics<parallel>, #tpu.dimension_semantics<parallel>], iteration_bounds = array<i64: 2, 1>, scalar_prefetch = 0 : i64, scratch_operands = 0 : i64, tpu.core_type = #tpu.core_type<tc>, window_params = [{transform_indices = @transform_0, window_bounds = array<i64: 1, 8, 16>}, {pipeline_mode = #tpu.pipeline_mode<synchronous>, transform_indices = @transform_1, window_bounds = array<i64: 16, 32>}, {pipeline_mode = #tpu.pipeline_mode<synchronous>, transform_indices = @transform_2, window_bounds = array<i64: 1, 32>}, {transform_indices = @transform_3, window_bounds = array<i64: 1, 8, 32>}]} {
    %c0 = arith.constant 0 : index
    %c0_0 = arith.constant 0 : index
    %c0_1 = arith.constant 0 : index
    %0 = vector.load %arg2[%c0, %c0_0, %c0_1] : memref<1x8x16xf32, #tpu.memory_space<vmem>>, vector<1x8x16xf32>
    %1 = vector.shape_cast %0 : vector<1x8x16xf32> to vector<8x16xf32>
    %2 = arith.truncf %1 : vector<8x16xf32> to vector<8x16xbf16>
    %c0_2 = arith.constant 0 : index
    %c0_3 = arith.constant 0 : index
    %3 = vector.load %arg3[%c0_2, %c0_3] : memref<16x32xbf16, #tpu.memory_space<vmem>>, vector<16x32xbf16>
    %cst = arith.constant dense<0.000000e+00> : vector<8x32xf32>
    %4 = tpu.matmul %2, %3, %cst {dimension_numbers = #tpu.dot_dimension_numbers<[1], [0], [0], [1], [0, 0, 1, 1], [], []>} : vector<8x16xbf16>, vector<16x32xbf16>, vector<8x32xf32> -> vector<8x32xf32>
    %c0_4 = arith.constant 0 : index
    %c0_5 = arith.constant 0 : index
    %5 = vector.load %arg4[%c0_4, %c0_5] : memref<1x32xf32, #tpu.memory_space<vmem>>, vector<1x32xf32>
    %6 = vector.broadcast %5 : vector<1x32xf32> to vector<8x32xf32>
    %7 = arith.addf %4, %6 : vector<8x32xf32>
    %8 = arith.truncf %7 : vector<8x32xf32> to vector<8x32xbf16>
    %c0_6 = arith.constant 0 : index
    %c0_7 = arith.constant 0 : index
    %c0_8 = arith.constant 0 : index
    %9 = vector.load %arg5[%c0_6, %c0_7, %c0_8] : memref<1x8x32xbf16, #tpu.memory_space<vmem>>, vector<1x8x32xbf16>
    %10 = vector.shape_cast %9 : vector<1x8x32xbf16> to vector<8x32xbf16>
    %11 = vector.shape_cast %8 : vector<8x32xbf16> to vector<1x8x32xbf16>
    tpu.vector_store %arg5[%c0_6, %c0_7, %c0_8], %11 {strides = array<i32>} : memref<1x8x32xbf16, #tpu.memory_space<vmem>>, vector<1x8x32xbf16>,
    return
  }
  func.func @transform_0(%arg0: i32, %arg1: i32) -> (i32, i32, i32) {
    %c0_i32 = arith.constant 0 : i32
    %c0_i32_0 = arith.constant 0 : i32
    return %arg0, %arg1, %c0_i32 : i32, i32, i32
  }
  func.func @transform_1(%arg0: i32, %arg1: i32) -> (i32, i32) {
    %c0_i32 = arith.constant 0 : i32
    %c0_i32_0 = arith.constant 0 : i32
    %c0_i32_1 = arith.constant 0 : i32
    return %c0_i32, %c0_i32_0 : i32, i32
  }
  func.func @transform_2(%arg0: i32, %arg1: i32) -> (i32, i32) {
    %c0_i32 = arith.constant 0 : i32
    %c0_i32_0 = arith.constant 0 : i32
    %c0_i32_1 = arith.constant 0 : i32
    return %c0_i32, %c0_i32_0 : i32, i32
  }
  func.func @transform_3(%arg0: i32, %arg1: i32) -> (i32, i32, i32) {
    %c0_i32 = arith.constant 0 : i32
    %c0_i32_0 = arith.constant 0 : i32
    return %arg0, %arg1, %c0_i32 : i32, i32, i32
  }
}

</mosaic_0001>

<llo_original>
// kernel: tpu_custom_call.1
$region0: #{tpu_custom_call.1}
  #allocation0 [shape = 'u32[]', space=smem, size = 0x4, offset = 0x4, fixed_abs, tag = 'smem constant byte address 0x4 - core index']
  #allocation1 [shape = 'u32[144,128]{1,0:T(1,128)}', space=vmem, size = 0x12000, scoped, tag = 'internal scratch']
  %s0 = inlined_call_operand.hbm [shape: f32[2,8,16], index: 0, kind: input, shape index: {}]
  %s1 = inlined_call_operand.hbm [shape: bf16[16,32], index: 1, kind: input, shape index: {}]
  %s2 = inlined_call_operand.vmem [shape: f32[1,32], index: 2, kind: input, shape index: {}]
  %s3 = inlined_call_operand.hbm [shape: bf16[2,8,32], index: 3, kind: output, shape index: {}]
  %s4 = sld [smem:[#allocation0]]
  $region53: #{tpu_custom_call.1} parent=0
    _
  %s6 = ssub.s32 1, %s4
  %s7 = scalar_select 0, %s6, %s4
  $region1: #{tpu_custom_call.1} parent=0
    #allocation2 [shape = 'u8[8192]{0}', space=vmem, size = 0x2000, scoped, tag = 'input window, operand 0']
    #allocation3 [shape = 's32[2]{0}', space=sflag, size = 0x8, scoped, tag = 'scoped memory for tpu_custom_call.1']
    #allocation4 [shape = 's32[2]{0}', space=sflag, size = 0x8, scoped, tag = 'scoped memory for tpu_custom_call.1']
    #allocation5 [shape = 'u8[4096]{0}', space=vmem, size = 0x1000, scoped, tag = 'input window, operand 1, single buffered']
    #allocation6 [shape = 's32[1]{0}', space=sflag, size = 0x4, scoped, tag = 'scoped memory for tpu_custom_call.1']
    #allocation7 [shape = 'u8[4096]{0}', space=vmem, size = 0x1000, scoped, tag = 'output window, operand 0']
    %8 = vsyncpa [#allocation3], 0
    %s9 = scalar_lea.sflag [#allocation3], 1
    %10 = vsyncpa %s9, 0
    %11 = vsyncpa [#allocation6], 0
    %12 = vsyncpa [#allocation4], 0
    %s13 = scalar_lea.sflag [#allocation4], 1
    %14 = vsyncpa %s13, 0
    loop: start=0, step=1, limit=4
    $region2: #{tpu_custom_call.1} parent=1 // loop_pre_header
      _
    $region3: #{tpu_custom_call.1} parent=1 // loop_header
      %s16 = sphi 0, %s20
      %p17 = scmp.ge.s32.totalorder %s16, 4
      %s23 = sphi 0, %s35
      %s24 = sphi 0, %s31
      %s25 = sphi 0, %s23
      %s26 = sphi 0, %s24
      %s27 = sphi 0, %s25
      %s28 = sphi 0, %s26
      %s40 = sphi 0, %s42
      %s43 = sphi 0, %s40
      %s44 = sphi 0, %s43
      %s60 = sphi 0, %s44
      %s64 = sphi 0, %s64
      %s66 = sphi 0, %s64
      %s67 = sphi 0, %s66
      %s81 = sphi 0, %s67
      %s85 = sphi 0, %s85
      %s87 = sphi 0, %s85
      %s88 = sphi 0, %s87
      %s102 = sphi 0, %s88
      %s110 = sphi 0, %s112
      %s113 = sphi 0, %s110
      %s114 = sphi 0, %s113
      %s130 = sphi 0, %s114
    $region4: #{tpu_custom_call.1} parent=1 // loop_header_branch
      %19 = sbr.rel (%p17) target = $region8
    $region5: #{tpu_custom_call.1} parent=1 // loop_body
      %s21 = ssub.s32 %s16, 1
      %s22 = ssub.s32 %s16, 2
      %s29 = sadd.s32 1, %s24
      %p30 = scmp.ge.s32.totalorder %s29, 1
      %s31 = scalar_select %p30, 0, %s29
      %s32 = sadd.s32 1, %s23
      %s33 = scalar_select %p30, %s32, %s23
      %p34 = scmp.ge.s32.totalorder %s33, 2
      %s35 = scalar_select %p34, 0, %s33
      %s36 = ssub.s32 %s23, %s35
      %s37 = ssub.s32 %s24, %s31
      %s38 = sor.u32 %s36, %s37
      %p39 = scmp.eq.s32.totalorder %s38, 0
      %s41 = sadd.s32 %s40, 1
      %s42 = scalar_select %p39, %s40, %s41
      %p45 = pneg %p39
      %p46 = scmp.eq.s32.totalorder %s16, 1
      %p47 = por %p45, %p46
      %p48 = scmp.ne.s32.totalorder %s40, %s43
      %p49 = scmp.eq.s32.totalorder %s16, 0
      %p50 = por %p48, %p49
      %p51 = scmp.ne.s32.totalorder %s40, %s43
      %p52 = scmp.eq.s32.totalorder %s21, 1
      %p53 = por %p51, %p52
      %p54 = scmp.ne.s32.totalorder %s43, %s44
      %p55 = scmp.eq.s32.totalorder %s21, 0
      %p56 = por %p54, %p55
      %p57 = scmp.ne.s32.totalorder %s43, %s44
      %p58 = scmp.eq.s32.totalorder %s22, 1
      %p59 = por %p57, %p58
      %p61 = scmp.ne.s32.totalorder %s44, %s60
      %p62 = scmp.eq.s32.totalorder %s22, 0
      %p63 = por %p61, %p62
      %s65 = sadd.s32 %s64, 1
      %p68 = scmp.eq.s32.totalorder %s16, 1
      %p69 = scmp.ne.s32.totalorder %s64, %s66
      %p70 = scmp.eq.s32.totalorder %s16, 0
      %p71 = por %p69, %p70
      %p72 = scmp.ne.s32.totalorder %s64, %s66
      %p73 = scmp.eq.s32.totalorder %s21, 1
      %p74 = por %p72, %p73
      %p75 = scmp.ne.s32.totalorder %s66, %s67
      %p76 = scmp.eq.s32.totalorder %s21, 0
      %p77 = por %p75, %p76
      %p78 = scmp.ne.s32.totalorder %s66, %s67
      %p79 = scmp.eq.s32.totalorder %s22, 1
      %p80 = por %p78, %p79
      %p82 = scmp.ne.s32.totalorder %s67, %s81
      %p83 = scmp.eq.s32.totalorder %s22, 0
      %p84 = por %p82, %p83
      %s86 = sadd.s32 %s85, 1
      %p89 = scmp.eq.s32.totalorder %s16, 1
      %p90 = scmp.ne.s32.totalorder %s85, %s87
      %p91 = scmp.eq.s32.totalorder %s16, 0
      %p92 = por %p90, %p91
      %p93 = scmp.ne.s32.totalorder %s85, %s87
      %p94 = scmp.eq.s32.totalorder %s21, 1
      %p95 = por %p93, %p94
      %p96 = scmp.ne.s32.totalorder %s87, %s88
      %p97 = scmp.eq.s32.totalorder %s21, 0
      %p98 = por %p96, %p97
      %p99 = scmp.ne.s32.totalorder %s87, %s88
      %p100 = scmp.eq.s32.totalorder %s22, 1
      %p101 = por %p99, %p100
      %p103 = scmp.ne.s32.totalorder %s88, %s102
      %p104 = scmp.eq.s32.totalorder %s22, 0
      %p105 = por %p103, %p104
      %s106 = ssub.s32 %s23, %s35
      %s107 = ssub.s32 %s24, %s31
      %s108 = sor.u32 %s106, %s107
      %p109 = scmp.eq.s32.totalorder %s108, 0
      %s111 = sadd.s32 %s110, 1
      %s112 = scalar_select %p109, %s110, %s111
      %p115 = pneg %p109
      %p116 = scmp.eq.s32.totalorder %s16, 1
      %p117 = por %p115, %p116
      %p118 = scmp.ne.s32.totalorder %s110, %s113
      %p119 = scmp.eq.s32.totalorder %s16, 0
      %p120 = por %p118, %p119
      %p121 = scmp.ne.s32.totalorder %s110, %s113
      %p122 = scmp.eq.s32.totalorder %s21, 1
      %p123 = por %p121, %p122
      %p124 = scmp.ne.s32.totalorder %s113, %s114
      %p125 = scmp.eq.s32.totalorder %s21, 0
      %p126 = por %p124, %p125
      %p127 = scmp.ne.s32.totalorder %s113, %s114
      %p128 = scmp.eq.s32.totalorder %s22, 1
      %p129 = por %p127, %p128
      %p131 = scmp.ne.s32.totalorder %s114, %s130
      %p132 = scmp.eq.s32.totalorder %s22, 0
      %p133 = por %p131, %p132
      %p134 = scmp.le.s32.totalorder 1, %s16
      %p135 = scmp.lt.s32.totalorder %s16, 3
      %p136 = pnand %p134, %p135
      %p137 = pneg %p136
      // Predicated region
      $region9: #{tpu_custom_call.1} parent=5 // pred_check
        _
      $region10: #{tpu_custom_call.1} parent=5 // pred_check_branch
        %139 = sbr.rel (%p136) target = $region12
      $region11: #{tpu_custom_call.1} parent=5 // pred_region
        %s140 = ssub.s32 %s16, 1
        // Predicated region
        $region13: #{tpu_custom_call.1} parent=11 // pred_check
          %p141 = pneg %p77
        $region14: #{tpu_custom_call.1} parent=11 // pred_check_branch
          %143 = sbr.rel (%p141) target = $region16
        $region15: #{tpu_custom_call.1} parent=11 // pred_region
          %s145 = ssub.s32 128, 128
          %146 = vsyncadd [#allocation6], %s145
          %s147 = sshll.u32 [#allocation5], 4
          %s148 = int_to_ptr.vmem [resolvable:$true] %s147
          %153 = dma.hbm_to_vmem [thread:$0]  %s1, 128, %s148, [#allocation6], 64, 64, 4
        $region16: #{tpu_custom_call.1} parent=11 // pred_fallthru
          _
        // Predicated region
        $region17: #{tpu_custom_call.1} parent=11 // pred_check
          %p154 = pneg %p98
        $region18: #{tpu_custom_call.1} parent=11 // pred_check_branch
          %156 = sbr.rel (%p154) target = $region20
        $region19: #{tpu_custom_call.1} parent=11 // pred_region
          _
        $region20: #{tpu_custom_call.1} parent=11 // pred_fallthru
          _
      $region12: #{tpu_custom_call.1} parent=5 // pred_fallthru
        _
      %p157 = scmp.lt.s32.totalorder %s16, 2
      // Predicated region
      $region21: #{tpu_custom_call.1} parent=5 // pred_check
        %p158 = pneg %p157
      $region22: #{tpu_custom_call.1} parent=5 // pred_check_branch
        %160 = sbr.rel (%p158) target = $region24
      $region23: #{tpu_custom_call.1} parent=5 // pred_region
        // Predicated region
        $region25: #{tpu_custom_call.1} parent=23 // pred_check
          %p161 = pneg %p50
        $region26: #{tpu_custom_call.1} parent=23 // pred_check_branch
          %163 = sbr.rel (%p161) target = $region28
        $region27: #{tpu_custom_call.1} parent=23 // pred_region
          %s164 = sand.u32 %s40, 1
          %s165 = scalar_lea.sflag [#allocation3], %s164
          %s166 = sand.u32 %s40, 1
          %s167 = smul.addr %s166, 8
          %s168 = scalar_lea.vmem [#allocation2], %s167
          %s170 = ssub.s32 128, 128
          %171 = vsyncadd %s165, %s170
          %s172 = sadd.s32 %s24, %s23
          %s173 = smul.addr %s172, 128
          %s174 = scalar_lea.hbm %s0, %s173
          %s176 = sshll.u32 %s168, 4
          %s177 = int_to_ptr.vmem [resolvable:$true] %s176
          %179 = dma.hbm_to_vmem [thread:$0]  %s174, 128, %s177, %s165
        $region28: #{tpu_custom_call.1} parent=23 // pred_fallthru
          _
      $region24: #{tpu_custom_call.1} parent=5 // pred_fallthru
        _
      %p180 = scmp.le.s32.totalorder 1, %s16
      %p181 = scmp.lt.s32.totalorder %s16, 3
      %p182 = pnand %p180, %p181
      %p183 = pneg %p182
      // Predicated region
      $region29: #{tpu_custom_call.1} parent=5 // pred_check
        _
      $region30: #{tpu_custom_call.1} parent=5 // pred_check_branch
        %185 = sbr.rel (%p182) target = $region32
      $region31: #{tpu_custom_call.1} parent=5 // pred_region
        %s186 = ssub.s32 %s16, 1
        %s187 = sand.u32 %s43, 1
        %s188 = scalar_lea.sflag [#allocation3], %s187
        %s189 = sand.u32 %s43, 1
        %s190 = smul.addr %s189, 8
        %s191 = scalar_lea.vmem [#allocation2], %s190
        // Predicated region
        $region33: #{tpu_custom_call.1} parent=31 // pred_check
          %p192 = pneg %p56
        $region34: #{tpu_custom_call.1} parent=31 // pred_check_branch
          %194 = sbr.rel (%p192) target = $region36
        $region35: #{tpu_custom_call.1} parent=31 // pred_region
          %195 = dma.done %s188, 128
        $region36: #{tpu_custom_call.1} parent=31 // pred_fallthru
          _
        // Predicated region
        $region37: #{tpu_custom_call.1} parent=31 // pred_check
          %p196 = pneg %p77
        $region38: #{tpu_custom_call.1} parent=31 // pred_check_branch
          %198 = sbr.rel (%p196) target = $region40
        $region39: #{tpu_custom_call.1} parent=31 // pred_region
          %199 = dma.done [#allocation6], 128
        $region40: #{tpu_custom_call.1} parent=31 // pred_fallthru
          _
        %s200 = sand.u32 %s43, 1
        %s201 = scalar_lea.sflag [#allocation3], %s200
        %s202 = sand.u32 %s43, 1
        %s203 = smul.addr %s202, 8
        %s204 = scalar_lea.vmem [#allocation2], %s203
        %p205 = pneg %p56
        %p206 = pneg %p53
        %p207 = pneg %p77
        %p208 = pneg %p74
        %p209 = pneg %p98
        %p210 = pneg %p95
        %p211 = pneg %p126
        %p212 = pneg %p123
        %s213 = sand.u32 %s113, 1
        %s214 = scalar_lea.sflag [#allocation4], %s213
        %s215 = sand.u32 %s113, 1
        %s216 = smul.addr %s215, 4
        %s217 = scalar_lea.vmem [#allocation7], %s216
        %v219 = vld [vmem:[%s191] sm:$0xff]
        %v220 = vpack.c.bf16 %v219, %v219
        %v221 = vld [vmem:[#allocation5] sm:$0xf]
        %v222 = vld [vmem:[#allocation5 + $0x4] sm:$0xf]
        %v223 = vld [vmem:[%s2] sm:$0x1]
        %v225 = vlaneseq
        %v226 = vshrl.u32 %v225, 7
        %v227 = vsub.s32 0, %v226
        %v228 = vrot.slane %v223, %v227
        %v232 = vunpack.c.l.b16 %v221
        %v233 = vunpack.c.l.b16 %v222
        %v234 = vpack.c.b16 %v233, %v232
        %vm236 = vcmask 130048
        %v238 = vsel %vm236, %v220, 0
        %240 = vmatprep.subr.bf16.mxu0 0
        %241 = vmatpush1.bf16.msra.mxu0 0
        %242 = vmatprep.subr.bf16.mxu0 0
        %243 = vmatpush1.bf16.msra.mxu0 0
        %244 = vmatprep.subr.bf16.mxu0 0
        %245 = vmatpush1.bf16.msra.mxu0 0
        %246 = vmatprep.subr.bf16.mxu0 0
        %247 = vmatpush1.bf16.msra.mxu0 0
        %248 = vmatprep.subr.bf16.mxu0 0
        %249 = vmatpush1.bf16.msra.mxu0 0
        %250 = vmatprep.subr.bf16.mxu0 0
        %251 = vmatpush1.bf16.msra.mxu0 0
        %252 = vmatprep.subr.bf16.mxu0 0
        %253 = vmatpush1.bf16.msra.mxu0 0
        %254 = vmatprep.subr.bf16.mxu0 0
        %255 = vmatpush1.bf16.msra.mxu0 %v234
        %256 = vmatprep.subr.bf16.mxu0 0
        %257 = vmatpush2.bf16.msra.mxu0 0
        %258 = vmatprep.subr.bf16.mxu0 0
        %259 = vmatpush2.bf16.msra.mxu0 0
        %260 = vmatprep.subr.bf16.mxu0 0
        %261 = vmatpush2.bf16.msra.mxu0 0
        %262 = vmatprep.subr.bf16.mxu0 0
        %263 = vmatpush2.bf16.msra.mxu0 0
        %264 = vmatprep.subr.bf16.mxu0 0
        %265 = vmatpush2.bf16.msra.mxu0 0
        %266 = vmatprep.subr.bf16.mxu0 0
        %267 = vmatpush2.bf16.msra.mxu0 0
        %268 = vmatprep.subr.bf16.mxu0 0
        %269 = vmatpush2.bf16.msra.mxu0 0
        %270 = vmatprep.subr.bf16.mxu0 0
        %271 = vmatpush2.bf16.msra.mxu0 0
        %272 = vmatprep.mubr.bf16.mxu0 0
        %273 = vmatmul.mubr.bf16.gmra.mxu0 %v238
        %v274 = vpop.f32.mrf.mxu0
        %v275 = vadd.f32 %v228, %v274
        %v276 = vpop.f32.mrf.mxu0
        %v277 = vpop.f32.mrf.mxu0
        %v278 = vpop.f32.mrf.mxu0
        %279 = vdwg.mxu0
        %v280 = vpack.c.bf16 %v275, %v275
        %vm281 = vcmask 257024
        %282 = vst.msk [vmem:[%s217] sm:$0xf] %vm281, %v280
        %s283 = sand.u32 %s113, 1
        %s284 = scalar_lea.sflag [#allocation4], %s283
        %s285 = sand.u32 %s113, 1
        %s286 = smul.addr %s285, 4
        %s287 = scalar_lea.vmem [#allocation7], %s286
        // Predicated region
        $region41: #{tpu_custom_call.1} parent=31 // pred_check
          %p288 = pneg %p123
        $region42: #{tpu_custom_call.1} parent=31 // pred_check_branch
          %290 = sbr.rel (%p288) target = $region44
        $region43: #{tpu_custom_call.1} parent=31 // pred_region
          %s292 = ssub.s32 64, 64
          %293 = vsyncadd %s284, %s292
          %s294 = sadd.s32 %s26, %s25
          %s295 = smul.addr %s294, 64
          %s296 = scalar_lea.hbm %s3, %s295
          %s298 = sshll.u32 %s287, 4
          %s299 = int_to_ptr.vmem [resolvable:$true] %s298
          %301 = dma.vmem_to_hbm [thread:$0]  %s299, 64, %s296, %s284
        $region44: #{tpu_custom_call.1} parent=31 // pred_fallthru
          _
      $region32: #{tpu_custom_call.1} parent=5 // pred_fallthru
        _
      %p302 = scmp.le.s32.totalorder 2, %s16
      // Predicated region
      $region45: #{tpu_custom_call.1} parent=5 // pred_check
        %p303 = pneg %p302
      $region46: #{tpu_custom_call.1} parent=5 // pred_check_branch
        %305 = sbr.rel (%p303) target = $region48
      $region47: #{tpu_custom_call.1} parent=5 // pred_region
        %s306 = ssub.s32 %s16, 2
        // Predicated region
        $region49: #{tpu_custom_call.1} parent=47 // pred_check
          %p307 = pneg %p129
        $region50: #{tpu_custom_call.1} parent=47 // pred_check_branch
          %309 = sbr.rel (%p307) target = $region52
        $region51: #{tpu_custom_call.1} parent=47 // pred_region
          %s310 = sand.u32 %s114, 1
          %s311 = scalar_lea.sflag [#allocation4], %s310
          %s312 = sand.u32 %s114, 1
          %s313 = smul.addr %s312, 4
          %s314 = scalar_lea.vmem [#allocation7], %s313
          %315 = dma.done %s311, 64
        $region52: #{tpu_custom_call.1} parent=47 // pred_fallthru
          _
      $region48: #{tpu_custom_call.1} parent=5 // pred_fallthru
        _
    $region6: #{tpu_custom_call.1} parent=1 // loop_footer
      %s20 = sadd.s32 1, %s16
    $region7: #{tpu_custom_call.1} parent=1 // loop_footer_branch
      %15 = sbr.rel target = $region3
    $region8: #{tpu_custom_call.1} parent=1 // loop_exit
      _
    %316 = vsyncpa [#allocation3], 1
    %s317 = scalar_lea.sflag [#allocation3], 1
    %318 = vsyncpa %s317, 1
    %319 = vsyncpa [#allocation6], 1
    %320 = vsyncpa [#allocation4], 1
    %s321 = scalar_lea.sflag [#allocation4], 1
    %322 = vsyncpa %s321, 1

</llo_original>
